<compile_context>
chip_gen: v5e
topology: v5e:2x2
jax: 0.10.0
libtpu: 0.0.40
codegen_flags: <defaults>
</compile_context>

<pallas_src>
import jax
import jax.numpy as jnp
from jax.experimental import pallas as pl
from jax.experimental.pallas import tpu as pltpu

# ---- module "hyper-parameters" (deterministic, set in-script) ----------------
T1 = 0.8                # temperature 1
T2 = 1.2                # temperature 2
LABEL_SMOOTHING = 0.1
NUM_ITERS = 5
REDUCTION = "mean"      # 'mean' | 'sum' | 'none'

OMT2 = 1.0 - T2         # -0.2
OMT1 = 1.0 - T1         #  0.2
TWO_MT1 = 2.0 - T1      #  1.2

# The pow-free fast path below is specialized for these temperatures.
assert abs(1.0 / OMT2 + 5.0) < 1e-9, "fast path assumes T2 = 1.2 (1/(1-T2) == -5)"
assert abs(T1 - 0.8) < 1e-9, "fast path assumes T1 = 0.8"
# TODO(synk): generic-temperature path (full-tile pow) not implemented; any change to
# T1/T2 must fall back to the pure-JAX reference.


# ---- python-float helpers (trace-time constants) ------------------------------
def _py_tempered_log(x, t):
    if t == 1.0:
        import math
        return math.log(x)
    return (x ** (1.0 - t) - 1.0) / (1.0 - t)


# ---- kernel -------------------------------------------------------------------
def _make_kernel(off_scale, hit_scale, k_const):
    off_scale = float(off_scale)     # off_val / (1 - T1)
    hit_scale = float(hit_scale)     # (on_val - off_val) / (1 - T1)
    k_const = float(k_const)         # all one-hot-only terms folded at trace time
    inv_2mt1 = float(1.0 / TWO_MT1)

    def kernel(act_ref, lab_ref, per_row_ref):
        x = act_ref[...].astype(jnp.float32)                      # [tn, C]
        tn, c = x.shape
        labels = lab_ref[...]                                      # [tn, 1] int32

        def recip(y, refine=False):
            # EUP vrcp; optional single Newton step -> ~f32-exact.
            r = pl.reciprocal(y, approx=True)
            if refine:
                r = r * (2.0 - y * r)
            return r

        mu = jnp.max(x, axis=-1, keepdims=True)                    # [tn, 1]
        b0 = OMT2 * (x - mu)                                       # >= 0 (hoisted scale)

        def u5_of(s):
            # tempered_exp argument for T2=1.2: u = relu(1 + b0*s); return u^5 (3 muls).
            u = jnp.maximum(b0 * s + 1.0, 0.0)
            u2 = u * u
            return (u2 * u2) * u

        # ---- tempered softmax: fixed-point normalization (exp_t2(a) = u^-5) ----
        u = jnp.maximum(b0 + 1.0, 0.0)                             # iteration 0: s = 1
        u2 = u * u
        zp = jnp.sum(recip((u2 * u2) * u), axis=-1, keepdims=True)
        for it in range(1, NUM_ITERS):
            s = zp ** OMT2                                         # per-row scalar (cheap)
            zp = jnp.sum(recip(u5_of(s), refine=(it == NUM_ITERS - 1)),
                         axis=-1, keepdims=True)
        # final partition value: feeds the output directly -> Newton-refined (exact).
        s = zp ** OMT2
        zp = jnp.sum(recip(u5_of(s), refine=True), axis=-1, keepdims=True)

        # probabilities = relu(zp^0.2 + b0)^(-5); only inv_v and inv_v^6 are needed:
        #   prob^(1-T1) = inv_v,   prob^(2-T1) = inv_v^6
        v = jnp.maximum(zp ** (-OMT2) + b0, 0.0)                   # one full-tile add
        inv_v = recip(v, refine=True)
        iv2 = inv_v * inv_v
        iv6 = (iv2 * iv2) * iv2

        class_ids = jax.lax.broadcasted_iota(jnp.int32, (tn, c), dimension=1)
        hit = class_ids == labels                                  # exactly one per row

        # Three row reductions (XLU has slack); everything else is folded into constants.
        s6 = jnp.sum(iv6, axis=-1, keepdims=True)
        s1 = jnp.sum(inv_v, axis=-1, keepdims=True)
        sh = jnp.sum(jnp.where(hit, inv_v, 0.0), axis=-1, keepdims=True)

        per_row_ref[...] = inv_2mt1 * s6 - off_scale * s1 - hit_scale * sh + k_const

    return kernel


# ---- wrapper ------------------------------------------------------------------
def bi_tempered_logistic_loss(activations, labels, *, max_tile_n=4096):
    n, c = activations.shape
    labels2d = labels.astype(jnp.int32).reshape(n, 1)

    # Trace-time scalar constants from the (smoothed) one-hot labels:
    # every row has exactly one "hit" and C-1 "miss" entries.
    on_val = (1.0 - LABEL_SMOOTHING * c / (c - 1)) + LABEL_SMOOTHING / (c - 1)
    off_val = LABEL_SMOOTHING / (c - 1)
    t1_hit = on_val * _py_tempered_log(on_val + 1e-10, T1)
    t1_miss = off_val * _py_tempered_log(off_val + 1e-10, T1)
    p_hit = on_val ** TWO_MT1 / TWO_MT1
    p_miss = off_val ** TWO_MT1 / TWO_MT1
    const_row_sum = (t1_hit - p_hit) + (c - 1) * (t1_miss - p_miss)
    # sum(onehot * tempered_log(prob,T1)) = off_scale*(S1 - C) + hit_scale*(Sh - 1)
    off_scale = off_val / OMT1
    hit_scale = (on_val - off_val) / OMT1
    k_const = const_row_sum + off_scale * c + hit_scale

    # ---- tile sizing: budget the f32 working set, not just the input bytes -----
    itemsize = jnp.dtype(activations.dtype).itemsize
    live_f32 = 8                                   # ~live [tile_n, C] f32 temporaries
    bytes_per_row = live_f32 * c * 4 + 2 * c * itemsize   # + double-buffered input block
    vmem_budget = 14 * 1024 * 1024                 # safe even vs v5e's 16 MiB default scope
    rows_cap = max(8, (vmem_budget // bytes_per_row) // 8 * 8)
    cap = int(min(max_tile_n, rows_cap))

    # Target ~256K elements per tile (amortize ~0.35 µs/step), but keep >=2 grid steps
    # when n >= 16 so v7x's two TensorCores both get work on the "parallel" axis.
    target_rows = max(8, (((256 * 1024) // max(c, 1)) + 7) // 8 * 8)
    tile_n = min(cap, target_rows)
    if n >= 16:
        tile_n = min(tile_n, max(8, (-(-n // 2) + 7) // 8 * 8))
    if tile_n >= n:
        tile_n = n                                 # single full-array block
    grid = (pl.cdiv(n, tile_n),)

    cost = pl.CostEstimate(
        flops=int(n * c * 48),
        transcendentals=int(n * c * (NUM_ITERS + 3) + n * (NUM_ITERS + 2)),
        bytes_accessed=int(n * c * itemsize + 3 * n * 4),
    )

    per_row = pl.pallas_call(
        _make_kernel(off_scale, hit_scale, k_const),
        out_shape=jax.ShapeDtypeStruct((n, 1), jnp.float32),
        grid=grid,
        in_specs=[
            pl.BlockSpec((tile_n, c), lambda i: (i, 0)),
            pl.BlockSpec((tile_n, 1), lambda i: (i, 0)),
        ],
        out_specs=pl.BlockSpec((tile_n, 1), lambda i: (i, 0)),
        compiler_params=pltpu.CompilerParams(
            dimension_semantics=("parallel",),
            vmem_limit_bytes=32 * 1024 * 1024,     # <= v7x 64 MiB physical; ample headroom
        ),
        cost_estimate=cost,
    )(activations, labels2d)

    per_row = per_row[:, 0]
    if REDUCTION == "none":
        return per_row
    if REDUCTION == "sum":
        return jnp.sum(per_row)
    return jnp.mean(per_row)   # divides by the GLOBAL n (reduction lives in the wrapper)


# ---- pure-JAX reference (matches the PyTorch module) --------------------------
def _tempered_log(x, t):
    if t == 1.0:
        return jnp.log(x)
    return (x ** (1.0 - t) - 1.0) / (1.0 - t)


def _tempered_exp(x, t):
    if t == 1.0:
        return jnp.exp(x)
    return jnp.maximum(1.0 + (1.0 - t) * x, 0.0) ** (1.0 / (1.0 - t))


def _reference(activations, labels):
    n, c = activations.shape
    onehot = jax.nn.one_hot(labels, c, dtype=jnp.float32)
    if LABEL_SMOOTHING > 0:
        onehot = (1.0 - LABEL_SMOOTHING * c / (c - 1)) * onehot + LABEL_SMOOTHING / (c - 1)
    x = activations.astype(jnp.float32)
    if T2 == 1.0:
        norm = jnp.log(jnp.sum(jnp.exp(x), axis=-1, keepdims=True))
    else:
        mu = jnp.max(x, axis=-1, keepdims=True)
        a0 = x - mu
        a = a0
        for _ in range(NUM_ITERS):
            zp = jnp.sum(_tempered_exp(a, T2), axis=-1, keepdims=True)
            a = a0 * zp ** (1.0 - T2)
        zp = jnp.sum(_tempered_exp(a, T2), axis=-1, keepdims=True)
        norm = -_tempered_log(1.0 / zp, T2) + mu
    probs = _tempered_exp(x - norm, T2)
    t1v = onehot * _tempered_log(onehot + 1e-10, T1)
    t2v = onehot * _tempered_log(probs, T1)
    lv = t1v - t2v - onehot ** (2.0 - T1) / (2.0 - T1) + probs ** (2.0 - T1) / (2.0 - T1)
    lv = lv.sum(-1)
    if REDUCTION == "none":
        return lv
    if REDUCTION == "sum":
        return lv.sum()
    return lv.mean()


if __name__ == "__main__":
    key = jax.random.PRNGKey(0)
    k_act, k_lab = jax.random.split(key)
    N, C = 16, 128
    activations = jax.random.normal(k_act, (N, C), dtype=jnp.float32)
    labels = jax.random.randint(k_lab, (N,), 0, C, dtype=jnp.int32)

    out = bi_tempered_logistic_loss(activations, labels)
    out = jax.block_until_ready(out)

    ref = _reference(activations, labels)
    assert jnp.allclose(out, ref, rtol=1e-4, atol=1e-4), (out, ref)
    print("KERNEL_OK")
</pallas_src>

<mosaic_0001>
module attributes {stable_mosaic.version = 11 : i64} {
  func.func @kernel(%arg0: i32, %arg1: memref<8x128xf32, #tpu.memory_space<vmem>>, %arg2: memref<8x1xi32, #tpu.memory_space<vmem>>, %arg3: memref<8x1xf32, #tpu.memory_space<vmem>>) attributes {dimension_semantics = [#tpu.dimension_semantics<parallel>], iteration_bounds = array<i64: 2>, scalar_prefetch = 0 : i64, scratch_operands = 0 : i64, tpu.core_type = #tpu.core_type<tc>, window_params = [{transform_indices = @transform_0, window_bounds = array<i64: 8, 128>}, {transform_indices = @transform_1, window_bounds = array<i64: 8, 1>}, {transform_indices = @transform_2, window_bounds = array<i64: 8, 1>}]} {
    %c0 = arith.constant 0 : index
    %c0_0 = arith.constant 0 : index
    %0 = vector.load %arg1[%c0, %c0_0] : memref<8x128xf32, #tpu.memory_space<vmem>>, vector<8x128xf32>
    %c0_1 = arith.constant 0 : index
    %c0_2 = arith.constant 0 : index
    %1 = vector.load %arg2[%c0_1, %c0_2] : memref<8x1xi32, #tpu.memory_space<vmem>>, vector<8x1xi32>
    %cst = arith.constant dense<0xFF800000> : vector<8xf32>
    %2 = vector.multi_reduction <maximumf>, %0, %cst [1] : vector<8x128xf32> to vector<8xf32>
    %3 = vector.shape_cast %2 : vector<8xf32> to vector<8x1xf32>
    %4 = vector.broadcast %3 : vector<8x1xf32> to vector<8x128xf32>
    %5 = arith.subf %0, %4 : vector<8x128xf32>
    %cst_3 = arith.constant -2.000000e-01 : f32
    %6 = vector.broadcast %cst_3 : f32 to vector<8x128xf32>
    %7 = arith.mulf %6, %5 : vector<8x128xf32>
    %cst_4 = arith.constant 1.000000e+00 : f32
    %8 = vector.broadcast %cst_4 : f32 to vector<8x128xf32>
    %9 = arith.addf %7, %8 : vector<8x128xf32>
    %cst_5 = arith.constant 0.000000e+00 : f32
    %10 = vector.broadcast %cst_5 : f32 to vector<8x128xf32>
    %11 = arith.maximumf %9, %10 : vector<8x128xf32>
    %12 = arith.mulf %11, %11 : vector<8x128xf32>
    %13 = arith.mulf %12, %12 : vector<8x128xf32>
    %14 = arith.mulf %13, %11 : vector<8x128xf32>
    %15 = tpu.reciprocal %14 {approx = true} : vector<8x128xf32> -> vector<8x128xf32>
    %cst_6 = arith.constant dense<0.000000e+00> : vector<8xf32>
    %16 = vector.multi_reduction <add>, %15, %cst_6 [1] : vector<8x128xf32> to vector<8xf32>
    %17 = vector.shape_cast %16 : vector<8xf32> to vector<8x1xf32>
    %cst_7 = arith.constant -2.000000e-01 : f32
    %18 = vector.broadcast %cst_7 : f32 to vector<8x1xf32>
    %19 = math.powf %17, %18 : vector<8x1xf32>
    %20 = vector.broadcast %19 : vector<8x1xf32> to vector<8x128xf32>
    %21 = arith.mulf %7, %20 : vector<8x128xf32>
    %cst_8 = arith.constant 1.000000e+00 : f32
    %22 = vector.broadcast %cst_8 : f32 to vector<8x128xf32>
    %23 = arith.addf %21, %22 : vector<8x128xf32>
    %cst_9 = arith.constant 0.000000e+00 : f32
    %24 = vector.broadcast %cst_9 : f32 to vector<8x128xf32>
    %25 = arith.maximumf %23, %24 : vector<8x128xf32>
    %26 = arith.mulf %25, %25 : vector<8x128xf32>
    %27 = arith.mulf %26, %26 : vector<8x128xf32>
    %28 = arith.mulf %27, %25 : vector<8x128xf32>
    %29 = tpu.reciprocal %28 {approx = true} : vector<8x128xf32> -> vector<8x128xf32>
    %cst_10 = arith.constant dense<0.000000e+00> : vector<8xf32>
    %30 = vector.multi_reduction <add>, %29, %cst_10 [1] : vector<8x128xf32> to vector<8xf32>
    %31 = vector.shape_cast %30 : vector<8xf32> to vector<8x1xf32>
    %cst_11 = arith.constant -2.000000e-01 : f32
    %32 = vector.broadcast %cst_11 : f32 to vector<8x1xf32>
    %33 = math.powf %31, %32 : vector<8x1xf32>
    %34 = vector.broadcast %33 : vector<8x1xf32> to vector<8x128xf32>
    %35 = arith.mulf %7, %34 : vector<8x128xf32>
    %cst_12 = arith.constant 1.000000e+00 : f32
    %36 = vector.broadcast %cst_12 : f32 to vector<8x128xf32>
    %37 = arith.addf %35, %36 : vector<8x128xf32>
    %cst_13 = arith.constant 0.000000e+00 : f32
    %38 = vector.broadcast %cst_13 : f32 to vector<8x128xf32>
    %39 = arith.maximumf %37, %38 : vector<8x128xf32>
    %40 = arith.mulf %39, %39 : vector<8x128xf32>
    %41 = arith.mulf %40, %40 : vector<8x128xf32>
    %42 = arith.mulf %41, %39 : vector<8x128xf32>
    %43 = tpu.reciprocal %42 {approx = true} : vector<8x128xf32> -> vector<8x128xf32>
    %cst_14 = arith.constant dense<0.000000e+00> : vector<8xf32>
    %44 = vector.multi_reduction <add>, %43, %cst_14 [1] : vector<8x128xf32> to vector<8xf32>
    %45 = vector.shape_cast %44 : vector<8xf32> to vector<8x1xf32>
    %cst_15 = arith.constant -2.000000e-01 : f32
    %46 = vector.broadcast %cst_15 : f32 to vector<8x1xf32>
    %47 = math.powf %45, %46 : vector<8x1xf32>
    %48 = vector.broadcast %47 : vector<8x1xf32> to vector<8x128xf32>
    %49 = arith.mulf %7, %48 : vector<8x128xf32>
    %cst_16 = arith.constant 1.000000e+00 : f32
    %50 = vector.broadcast %cst_16 : f32 to vector<8x128xf32>
    %51 = arith.addf %49, %50 : vector<8x128xf32>
    %cst_17 = arith.constant 0.000000e+00 : f32
    %52 = vector.broadcast %cst_17 : f32 to vector<8x128xf32>
    %53 = arith.maximumf %51, %52 : vector<8x128xf32>
    %54 = arith.mulf %53, %53 : vector<8x128xf32>
    %55 = arith.mulf %54, %54 : vector<8x128xf32>
    %56 = arith.mulf %55, %53 : vector<8x128xf32>
    %57 = tpu.reciprocal %56 {approx = true} : vector<8x128xf32> -> vector<8x128xf32>
    %cst_18 = arith.constant dense<0.000000e+00> : vector<8xf32>
    %58 = vector.multi_reduction <add>, %57, %cst_18 [1] : vector<8x128xf32> to vector<8xf32>
    %59 = vector.shape_cast %58 : vector<8xf32> to vector<8x1xf32>
    %cst_19 = arith.constant -2.000000e-01 : f32
    %60 = vector.broadcast %cst_19 : f32 to vector<8x1xf32>
    %61 = math.powf %59, %60 : vector<8x1xf32>
    %62 = vector.broadcast %61 : vector<8x1xf32> to vector<8x128xf32>
    %63 = arith.mulf %7, %62 : vector<8x128xf32>
    %cst_20 = arith.constant 1.000000e+00 : f32
    %64 = vector.broadcast %cst_20 : f32 to vector<8x128xf32>
    %65 = arith.addf %63, %64 : vector<8x128xf32>
    %cst_21 = arith.constant 0.000000e+00 : f32
    %66 = vector.broadcast %cst_21 : f32 to vector<8x128xf32>
    %67 = arith.maximumf %65, %66 : vector<8x128xf32>
    %68 = arith.mulf %67, %67 : vector<8x128xf32>
    %69 = arith.mulf %68, %68 : vector<8x128xf32>
    %70 = arith.mulf %69, %67 : vector<8x128xf32>
    %71 = tpu.reciprocal %70 {approx = true} : vector<8x128xf32> -> vector<8x128xf32>
    %72 = arith.mulf %70, %71 : vector<8x128xf32>
    %cst_22 = arith.constant 2.000000e+00 : f32
    %73 = vector.broadcast %cst_22 : f32 to vector<8x128xf32>
    %74 = arith.subf %73, %72 : vector<8x128xf32>
    %75 = arith.mulf %71, %74 : vector<8x128xf32>
    %cst_23 = arith.constant dense<0.000000e+00> : vector<8xf32>
    %76 = vector.multi_reduction <add>, %75, %cst_23 [1] : vector<8x128xf32> to vector<8xf32>
    %77 = vector.shape_cast %76 : vector<8xf32> to vector<8x1xf32>
    %cst_24 = arith.constant -2.000000e-01 : f32
    %78 = vector.broadcast %cst_24 : f32 to vector<8x1xf32>
    %79 = math.powf %77, %78 : vector<8x1xf32>
    %80 = vector.broadcast %79 : vector<8x1xf32> to vector<8x128xf32>
    %81 = arith.mulf %7, %80 : vector<8x128xf32>
    %cst_25 = arith.constant 1.000000e+00 : f32
    %82 = vector.broadcast %cst_25 : f32 to vector<8x128xf32>
    %83 = arith.addf %81, %82 : vector<8x128xf32>
    %cst_26 = arith.constant 0.000000e+00 : f32
    %84 = vector.broadcast %cst_26 : f32 to vector<8x128xf32>
    %85 = arith.maximumf %83, %84 : vector<8x128xf32>
    %86 = arith.mulf %85, %85 : vector<8x128xf32>
    %87 = arith.mulf %86, %86 : vector<8x128xf32>
    %88 = arith.mulf %87, %85 : vector<8x128xf32>
    %89 = tpu.reciprocal %88 {approx = true} : vector<8x128xf32> -> vector<8x128xf32>
    %90 = arith.mulf %88, %89 : vector<8x128xf32>
    %cst_27 = arith.constant 2.000000e+00 : f32
    %91 = vector.broadcast %cst_27 : f32 to vector<8x128xf32>
    %92 = arith.subf %91, %90 : vector<8x128xf32>
    %93 = arith.mulf %89, %92 : vector<8x128xf32>
    %cst_28 = arith.constant dense<0.000000e+00> : vector<8xf32>
    %94 = vector.multi_reduction <add>, %93, %cst_28 [1] : vector<8x128xf32> to vector<8xf32>
    %95 = vector.shape_cast %94 : vector<8xf32> to vector<8x1xf32>
    %cst_29 = arith.constant 2.000000e-01 : f32
    %96 = vector.broadcast %cst_29 : f32 to vector<8x1xf32>
    %97 = math.powf %95, %96 : vector<8x1xf32>
    %98 = vector.broadcast %97 : vector<8x1xf32> to vector<8x128xf32>
    %99 = arith.addf %98, %7 : vector<8x128xf32>
    %cst_30 = arith.constant 0.000000e+00 : f32
    %100 = vector.broadcast %cst_30 : f32 to vector<8x128xf32>
    %101 = arith.maximumf %99, %100 : vector<8x128xf32>
    %102 = tpu.reciprocal %101 {approx = true} : vector<8x128xf32> -> vector<8x128xf32>
    %103 = arith.mulf %101, %102 : vector<8x128xf32>
    %cst_31 = arith.constant 2.000000e+00 : f32
    %104 = vector.broadcast %cst_31 : f32 to vector<8x128xf32>
    %105 = arith.subf %104, %103 : vector<8x128xf32>
    %106 = arith.mulf %102, %105 : vector<8x128xf32>
    %107 = arith.mulf %106, %106 : vector<8x128xf32>
    %108 = arith.mulf %107, %107 : vector<8x128xf32>
    %109 = arith.mulf %108, %107 : vector<8x128xf32>
    %110 = tpu.iota {dimensions = array<i32: 1>} : vector<8x128xi32>
    %111 = vector.broadcast %1 : vector<8x1xi32> to vector<8x128xi32>
    %112 = arith.cmpi eq, %110, %111 : vector<8x128xi32>
    %cst_32 = arith.constant dense<0.000000e+00> : vector<8xf32>
    %113 = vector.multi_reduction <add>, %109, %cst_32 [1] : vector<8x128xf32> to vector<8xf32>
    %114 = vector.shape_cast %113 : vector<8xf32> to vector<8x1xf32>
    %cst_33 = arith.constant dense<0.000000e+00> : vector<8xf32>
    %115 = vector.multi_reduction <add>, %106, %cst_33 [1] : vector<8x128xf32> to vector<8xf32>
    %116 = vector.shape_cast %115 : vector<8xf32> to vector<8x1xf32>
    %cst_34 = arith.constant 0.000000e+00 : f32
    %117 = vector.broadcast %cst_34 : f32 to vector<8x128xf32>
    %118 = arith.select %112, %106, %117 : vector<8x128xi1>, vector<8x128xf32>
    %cst_35 = arith.constant dense<0.000000e+00> : vector<8xf32>
    %119 = vector.multi_reduction <add>, %118, %cst_35 [1] : vector<8x128xf32> to vector<8xf32>
    %120 = vector.shape_cast %119 : vector<8xf32> to vector<8x1xf32>
    %cst_36 = arith.constant 0.833333313 : f32
    %121 = vector.broadcast %cst_36 : f32 to vector<8x1xf32>
    %122 = arith.mulf %121, %114 : vector<8x1xf32>
    %cst_37 = arith.constant 0.00393700786 : f32
    %123 = vector.broadcast %cst_37 : f32 to vector<8x1xf32>
    %124 = arith.mulf %123, %116 : vector<8x1xf32>
    %125 = arith.subf %122, %124 : vector<8x1xf32>
    %cst_38 = arith.constant 4.49606276 : f32
    %126 = vector.broadcast %cst_38 : f32 to vector<8x1xf32>
    %127 = arith.mulf %126, %120 : vector<8x1xf32>
    %128 = arith.subf %125, %127 : vector<8x1xf32>
    %cst_39 = arith.constant 3.77158284 : f32
    %129 = vector.broadcast %cst_39 : f32 to vector<8x1xf32>
    %130 = arith.addf %128, %129 : vector<8x1xf32>
    %c0_40 = arith.constant 0 : index
    %c0_41 = arith.constant 0 : index
    %131 = vector.load %arg3[%c0_40, %c0_41] : memref<8x1xf32, #tpu.memory_space<vmem>>, vector<8x1xf32>
    tpu.vector_store %arg3[%c0_40, %c0_41], %130 {strides = array<i32>} : memref<8x1xf32, #tpu.memory_space<vmem>>, vector<8x1xf32>,
    return
  }
  func.func @transform_0(%arg0: i32) -> (i32, i32) {
    %c0_i32 = arith.constant 0 : i32
    %c0_i32_0 = arith.constant 0 : i32
    return %arg0, %c0_i32 : i32, i32
  }
  func.func @transform_1(%arg0: i32) -> (i32, i32) {
    %c0_i32 = arith.constant 0 : i32
    %c0_i32_0 = arith.constant 0 : i32
    return %arg0, %c0_i32 : i32, i32
  }
  func.func @transform_2(%arg0: i32) -> (i32, i32) {
    %c0_i32 = arith.constant 0 : i32
    %c0_i32_0 = arith.constant 0 : i32
    return %arg0, %c0_i32 : i32, i32
  }
}

</mosaic_0001>

<llo_original>
// kernel: tpu_custom_call.1
$region0: #{tpu_custom_call.1}
  #allocation0 [shape = 'u32[]', space=smem, size = 0x4, offset = 0x4, fixed_abs, tag = 'smem constant byte address 0x4 - core index']
  #allocation1 [shape = 'u32[72,128]{1,0:T(1,128)}', space=vmem, size = 0x9000, scoped, tag = 'internal scratch']
  %s0 = inlined_call_operand.vmem [shape: f32[16,128], index: 0, kind: input, shape index: {}]
  %s1 = inlined_call_operand.vmem [shape: s32[16,1], index: 1, kind: input, shape index: {}]
  %s2 = inlined_call_operand.vmem [shape: f32[16,1], index: 2, kind: output, shape index: {}]
  %s3 = sld [smem:[#allocation0]]
  $region41: #{tpu_custom_call.1} parent=0
    _
  %s5 = ssub.s32 1, %s3
  %s6 = scalar_select 0, %s5, %s3
  loop: start=0, step=1, limit=4
  $region2: #{tpu_custom_call.1} parent=0 // loop_pre_header
    _
  $region3: #{tpu_custom_call.1} parent=0 // loop_header
    %s8 = sphi 0, %s12
    %p9 = scmp.ge.s32.totalorder %s8, 4
    %s18 = sphi 0, %s20
    %s21 = sphi 0, %s18
    %s22 = sphi 0, %s21
    %s38 = sphi 0, %s22
    %s44 = sphi 0, %s46
    %s47 = sphi 0, %s44
    %s48 = sphi 0, %s47
    %s64 = sphi 0, %s48
    %s70 = sphi 0, %s72
    %s73 = sphi 0, %s70
    %s74 = sphi 0, %s73
    %s90 = sphi 0, %s74
  $region4: #{tpu_custom_call.1} parent=0 // loop_header_branch
    %11 = sbr.rel (%p9) target = $region8
  $region5: #{tpu_custom_call.1} parent=0 // loop_body
    %s13 = ssub.s32 %s8, 1
    %s14 = ssub.s32 %s8, 2
    %s15 = sadd.s32 %s8, 1
    %s16 = ssub.s32 %s8, %s15
    %p17 = scmp.eq.s32.totalorder %s16, 0
    %s19 = sadd.s32 %s18, 1
    %s20 = scalar_select %p17, %s18, %s19
    %p23 = pneg %p17
    %p24 = scmp.eq.s32.totalorder %s8, 1
    %p25 = por %p23, %p24
    %p26 = scmp.ne.s32.totalorder %s18, %s21
    %p27 = scmp.eq.s32.totalorder %s8, 0
    %p28 = por %p26, %p27
    %p29 = scmp.ne.s32.totalorder %s18, %s21
    %p30 = scmp.eq.s32.totalorder %s13, 1
    %p31 = por %p29, %p30
    %p32 = scmp.ne.s32.totalorder %s21, %s22
    %p33 = scmp.eq.s32.totalorder %s13, 0
    %p34 = por %p32, %p33
    %p35 = scmp.ne.s32.totalorder %s21, %s22
    %p36 = scmp.eq.s32.totalorder %s14, 1
    %p37 = por %p35, %p36
    %p39 = scmp.ne.s32.totalorder %s22, %s38
    %p40 = scmp.eq.s32.totalorder %s14, 0
    %p41 = por %p39, %p40
    %s42 = ssub.s32 %s8, %s15
    %p43 = scmp.eq.s32.totalorder %s42, 0
    %s45 = sadd.s32 %s44, 1
    %s46 = scalar_select %p43, %s44, %s45
    %p49 = pneg %p43
    %p50 = scmp.eq.s32.totalorder %s8, 1
    %p51 = por %p49, %p50
    %p52 = scmp.ne.s32.totalorder %s44, %s47
    %p53 = scmp.eq.s32.totalorder %s8, 0
    %p54 = por %p52, %p53
    %p55 = scmp.ne.s32.totalorder %s44, %s47
    %p56 = scmp.eq.s32.totalorder %s13, 1
    %p57 = por %p55, %p56
    %p58 = scmp.ne.s32.totalorder %s47, %s48
    %p59 = scmp.eq.s32.totalorder %s13, 0
    %p60 = por %p58, %p59
    %p61 = scmp.ne.s32.totalorder %s47, %s48
    %p62 = scmp.eq.s32.totalorder %s14, 1
    %p63 = por %p61, %p62
    %p65 = scmp.ne.s32.totalorder %s48, %s64
    %p66 = scmp.eq.s32.totalorder %s14, 0
    %p67 = por %p65, %p66
    %s68 = ssub.s32 %s8, %s15
    %p69 = scmp.eq.s32.totalorder %s68, 0
    %s71 = sadd.s32 %s70, 1
    %s72 = scalar_select %p69, %s70, %s71
    %p75 = pneg %p69
    %p76 = scmp.eq.s32.totalorder %s8, 1
    %p77 = por %p75, %p76
    %p78 = scmp.ne.s32.totalorder %s70, %s73
    %p79 = scmp.eq.s32.totalorder %s8, 0
    %p80 = por %p78, %p79
    %p81 = scmp.ne.s32.totalorder %s70, %s73
    %p82 = scmp.eq.s32.totalorder %s13, 1
    %p83 = por %p81, %p82
    %p84 = scmp.ne.s32.totalorder %s73, %s74
    %p85 = scmp.eq.s32.totalorder %s13, 0
    %p86 = por %p84, %p85
    %p87 = scmp.ne.s32.totalorder %s73, %s74
    %p88 = scmp.eq.s32.totalorder %s14, 1
    %p89 = por %p87, %p88
    %p91 = scmp.ne.s32.totalorder %s74, %s90
    %p92 = scmp.eq.s32.totalorder %s14, 0
    %p93 = por %p91, %p92
    %p94 = scmp.le.s32.totalorder 1, %s8
    %p95 = scmp.lt.s32.totalorder %s8, 3
    %p96 = pnand %p94, %p95
    %p97 = pneg %p96
    // Predicated region
    $region9: #{tpu_custom_call.1} parent=5 // pred_check
      _
    $region10: #{tpu_custom_call.1} parent=5 // pred_check_branch
      %99 = sbr.rel (%p96) target = $region12
    $region11: #{tpu_custom_call.1} parent=5 // pred_region
      %s100 = ssub.s32 %s8, 1
    $region12: #{tpu_custom_call.1} parent=5 // pred_fallthru
      _
    %p101 = scmp.lt.s32.totalorder %s8, 2
    // Predicated region
    $region13: #{tpu_custom_call.1} parent=5 // pred_check
      %p102 = pneg %p101
    $region14: #{tpu_custom_call.1} parent=5 // pred_check_branch
      %104 = sbr.rel (%p102) target = $region16
    $region15: #{tpu_custom_call.1} parent=5 // pred_region
      // Predicated region
      $region17: #{tpu_custom_call.1} parent=15 // pred_check
        %p105 = pneg %p28
      $region18: #{tpu_custom_call.1} parent=15 // pred_check_branch
        %107 = sbr.rel (%p105) target = $region20
      $region19: #{tpu_custom_call.1} parent=15 // pred_region
        %p108 = scmp.lt.s32.totalorder %s8, 1
        %s109 = scalar_select %p108, %s8, 1
        %s110 = smul.addr %s109, 8
        %s111 = scalar_lea.vmem %s0, %s110
      $region20: #{tpu_custom_call.1} parent=15 // pred_fallthru
        _
      // Predicated region
      $region21: #{tpu_custom_call.1} parent=15 // pred_check
        %p112 = pneg %p54
      $region22: #{tpu_custom_call.1} parent=15 // pred_check_branch
        %114 = sbr.rel (%p112) target = $region24
      $region23: #{tpu_custom_call.1} parent=15 // pred_region
        %p115 = scmp.lt.s32.totalorder %s8, 1
        %s116 = scalar_select %p115, %s8, 1
        %s117 = smul.addr %s116, 8
        %s118 = scalar_lea.vmem %s1, %s117
      $region24: #{tpu_custom_call.1} parent=15 // pred_fallthru
        _
    $region16: #{tpu_custom_call.1} parent=5 // pred_fallthru
      _
    %p119 = scmp.le.s32.totalorder 1, %s8
    %p120 = scmp.lt.s32.totalorder %s8, 3
    %p121 = pnand %p119, %p120
    %p122 = pneg %p121
    // Predicated region
    $region25: #{tpu_custom_call.1} parent=5 // pred_check
      _
    $region26: #{tpu_custom_call.1} parent=5 // pred_check_branch
      %124 = sbr.rel (%p121) target = $region28
    $region27: #{tpu_custom_call.1} parent=5 // pred_region
      %s125 = ssub.s32 %s8, 1
      %p126 = scmp.lt.s32.totalorder %s13, 1
      %s127 = scalar_select %p126, %s13, 1
      %s128 = smul.addr %s127, 8
      %s129 = scalar_lea.vmem %s0, %s128
      %p130 = pneg %p34
      %p131 = pneg %p31
      %p132 = scmp.lt.s32.totalorder %s13, 1
      %s133 = scalar_select %p132, %s13, 1
      %s134 = smul.addr %s133, 8
      %s135 = scalar_lea.vmem %s1, %s134
      %p136 = pneg %p60
      %p137 = pneg %p57
      %p138 = pneg %p86
      %p139 = pneg %p83
      %p140 = scmp.lt.s32.totalorder %s13, 1
      %s141 = scalar_select %p140, %s13, 1
      %s142 = smul.addr %s141, 8
      %s143 = scalar_lea.vmem %s2, %s142
      %p144 = scmp.lt.s32.totalorder %s13, 1
      %s145 = scalar_select %p144, %s13, 1
      %s146 = smul.addr %s145, 8
      %s147 = scalar_lea.vmem %s0, %s146
      %p148 = scmp.lt.s32.totalorder %s13, 1
      %s149 = scalar_select %p148, %s13, 1
      %s150 = smul.addr %s149, 8
      %s151 = scalar_lea.vmem %s1, %s150
      %p152 = scmp.lt.s32.totalorder %s13, 1
      %s153 = scalar_select %p152, %s13, 1
      %s154 = smul.addr %s153, 8
      %s155 = scalar_lea.vmem %s2, %s154
      %v156 = vld [vmem:[%s147] sm:$0xff]
      %v157 = vld [vmem:[%s151] sm:$0xff]
      %158 = vmax.xlane.f32.xlu0 %v156
      %v159 = vpop.xlane.xlu0 %158
      %v160 = vsub.f32 %v156, %v159
      %v161 = vmul.f32 %v160, -0.2
      %v162 = vadd.f32 %v161, 1.0
      %v163 = vmax.f32 %v162, 0.0
      %v164 = vmul.f32 %v163, %v163
      %v165 = vmul.f32 %v164, %v164
      %v166 = vmul.f32 %v165, %v163
      %v167 = vrcp.pop %v166
      %168 = vadd.xlane.f32.xlu0 %v167
      %v169 = vpop.xlane.xlu0 %168
      %v170 = vpow.f32 %v169, -0.2
      %v171 = vmul.f32 %v161, %v170
      %v172 = vadd.f32 %v171, 1.0
      %v173 = vmax.f32 %v172, 0.0
      %v174 = vmul.f32 %v173, %v173
      %v175 = vmul.f32 %v174, %v174
      %v176 = vmul.f32 %v175, %v173
      %v177 = vrcp.pop %v176
      %178 = vadd.xlane.f32.xlu0 %v177
      %v179 = vpop.xlane.xlu0 %178
      %v180 = vpow.f32 %v179, -0.2
      %v181 = vmul.f32 %v161, %v180
      %v182 = vadd.f32 %v181, 1.0
      %v183 = vmax.f32 %v182, 0.0
      %v184 = vmul.f32 %v183, %v183
      %v185 = vmul.f32 %v184, %v184
      %v186 = vmul.f32 %v185, %v183
      %v187 = vrcp.pop %v186
      %188 = vadd.xlane.f32.xlu0 %v187
      %v189 = vpop.xlane.xlu0 %188
      %v190 = vpow.f32 %v189, -0.2
      %v191 = vmul.f32 %v161, %v190
      %v192 = vadd.f32 %v191, 1.0
      %v193 = vmax.f32 %v192, 0.0
      %v194 = vmul.f32 %v193, %v193
      %v195 = vmul.f32 %v194, %v194
      %v196 = vmul.f32 %v195, %v193
      %v197 = vrcp.pop %v196
      %198 = vadd.xlane.f32.xlu0 %v197
      %v199 = vpop.xlane.xlu0 %198
      %v200 = vpow.f32 %v199, -0.2
      %v201 = vmul.f32 %v161, %v200
      %v202 = vadd.f32 %v201, 1.0
      %v203 = vmax.f32 %v202, 0.0
      %v204 = vmul.f32 %v203, %v203
      %v205 = vmul.f32 %v204, %v204
      %v206 = vmul.f32 %v205, %v203
      %v207 = vrcp.pop %v206
      %v208 = vmul.f32 %v206, %v207
      %v209 = vsub.f32 2.0, %v208
      %v210 = vmul.f32 %v207, %v209
      %211 = vadd.xlane.f32.xlu0 %v210
      %v212 = vpop.xlane.xlu0 %211
      %v213 = vpow.f32 %v212, -0.2
      %v214 = vmul.f32 %v161, %v213
      %v215 = vadd.f32 %v214, 1.0
      %v216 = vmax.f32 %v215, 0.0
      %v217 = vmul.f32 %v216, %v216
      %v218 = vmul.f32 %v217, %v217
      %v219 = vmul.f32 %v218, %v216
      %v220 = vrcp.pop %v219
      %v221 = vmul.f32 %v219, %v220
      %v222 = vsub.f32 2.0, %v221
      %v223 = vmul.f32 %v220, %v222
      %224 = vadd.xlane.f32.xlu0 %v223
      %v225 = vpop.xlane.xlu0 %224
      %v226 = vpow.f32 %v225, 0.2
      %v227 = vadd.f32 %v226, %v161
      %v228 = vmax.f32 %v227, 0.0
      %v229 = vrcp.pop %v228
      %v230 = vmul.f32 %v228, %v229
      %v231 = vsub.f32 2.0, %v230
      %v232 = vmul.f32 %v229, %v231
      %v233 = vmul.f32 %v232, %v232
      %v234 = vmul.f32 %v233, %v233
      %v235 = vmul.f32 %v234, %v233
      %v236 = vlaneseq
      %v237 = vand.u32 %v236, 127
      %238 = vset.pattern.permute.xlu0 0
      %239 = vperm.xlu0 %238, %v157
      %v240 = vpop.permute.xlu0 %239
      %vm241 = vcmp.eq.s32.totalorder %v237, %v240
      %242 = vadd.xlane.f32.xlu0 %v235
      %v243 = vpop.xlane.xlu0 %242
      %244 = vadd.xlane.f32.xlu0 %v232
      %v245 = vpop.xlane.xlu0 %244
      %v246 = vsel %vm241, %v232, 0.0
      %247 = vadd.xlane.f32.xlu0 %v246
      %v248 = vpop.xlane.xlu0 %247
      %v249 = vmul.f32 %v243, 0.8333333
      %v250 = vmul.f32 %v245, 0.003937008
      %v251 = vsub.f32 %v249, %v250
      %v252 = vmul.f32 %v248, 4.4960628
      %v253 = vsub.f32 %v251, %v252
      %v254 = vadd.f32 %v253, 3.7715828
      %vm255 = vcmask 7168
      %256 = vst.msk [vmem:[%s155] sm:$0xff] %vm255, %v254
      %p257 = scmp.lt.s32.totalorder %s13, 1
      %s258 = scalar_select %p257, %s13, 1
      %s259 = smul.addr %s258, 8
      %s260 = scalar_lea.vmem %s2, %s259
      // Predicated region
      $region29: #{tpu_custom_call.1} parent=27 // pred_check
        %p261 = pneg %p83
      $region30: #{tpu_custom_call.1} parent=27 // pred_check_branch
        %263 = sbr.rel (%p261) target = $region32
      $region31: #{tpu_custom_call.1} parent=27 // pred_region
        _
      $region32: #{tpu_custom_call.1} parent=27 // pred_fallthru
        _
    $region28: #{tpu_custom_call.1} parent=5 // pred_fallthru
      _
    %p264 = scmp.le.s32.totalorder 2, %s8
    // Predicated region
    $region33: #{tpu_custom_call.1} parent=5 // pred_check
      %p265 = pneg %p264
    $region34: #{tpu_custom_call.1} parent=5 // pred_check_branch
      %267 = sbr.rel (%p265) target = $region36
    $region35: #{tpu_custom_call.1} parent=5 // pred_region
      %s268 = ssub.s32 %s8, 2
      // Predicated region
      $region37: #{tpu_custom_call.1} parent=35 // pred_check
        %p269 = pneg %p89
      $region38: #{tpu_custom_call.1} parent=35 // pred_check_branch
        %271 = sbr.rel (%p269) target = $region40
      $region39: #{tpu_custom_call.1} parent=35 // pred_region
        %p272 = scmp.lt.s32.totalorder %s14, 1
        %s273 = scalar_select %p272, %s14, 1
        %s274 = smul.addr %s273, 8
        %s275 = scalar_lea.vmem %s2, %s274
      $region40: #{tpu_custom_call.1} parent=35 // pred_fallthru
        _
    $region36: #{tpu_custom_call.1} parent=5 // pred_fallthru
      _
  $region6: #{tpu_custom_call.1} parent=0 // loop_footer
    %s12 = sadd.s32 1, %s8
  $region7: #{tpu_custom_call.1} parent=0 // loop_footer_branch
    %7 = sbr.rel target = $region3
  $region8: #{tpu_custom_call.1} parent=0 // loop_exit
    _

</llo_original>
